<compile_context>
chip_gen: v7x
topology: tpu7x:2x2x1
jax: 0.10.0
libtpu: 0.0.40
codegen_flags: <defaults>
</compile_context>

<pallas_src>
import functools

import jax
import jax.numpy as jnp
from jax.experimental import pallas as pl
from jax.experimental.pallas import tpu as pltpu

_SUB = 8      # sublane tile (f32)
_LANE = 128   # lane tile


def _round_up(x, m):
    return ((x + m - 1) // m) * m


def _default_num_cores():
    # v7x has 2 TensorCores per chip; v5e/v6e have 1.  Best-effort detection;
    # falling back to 1 is always correct (just forgoes the 2-TC split).
    try:
        info = pltpu.get_tpu_info()
        for attr in ("num_cores", "num_tensorcores", "tensorcores_per_chip"):
            n = getattr(info, attr, None)
            if isinstance(n, int) and n >= 2:
                return 2
    except Exception:
        pass
    return 1


def _kld_loss_kernel(x_ref, y_ref, o_ref, *, inv_beta, tile_rows,
                     tiles_per_core, num_tiles, rows_full, mask_last,
                     skip_extra):
    """Smooth-L1 on (x - y) * inv_beta, accumulated into an (8,128) output block.

    x_ref, y_ref : (tile_rows, 128) VMEM tiles (native input dtype)
    o_ref        : (8, 128) per-core partial-sum block (resident across axis 1)
    """
    c = pl.program_id(0)   # core / outer (parallel) axis
    i = pl.program_id(1)   # sequential reduction axis
    t = c * tiles_per_core + i   # logical tile index

    @pl.when(i == 0)
    def _init():
        o_ref[...] = jnp.zeros_like(o_ref)

    x = x_ref[...].astype(jnp.float32)
    y = y_ref[...].astype(jnp.float32)
    z = (x - y) * inv_beta
    az = jnp.abs(z)
    elem = jnp.where(az < 1.0, 0.5 * z * z, az - 0.5)

    def _fold(e):
        # Fold tile_rows -> 8 sublanes with cheap vreg adds (VPU only, no XLU).
        return e.reshape(tile_rows // _SUB, _SUB, _LANE).sum(axis=0)

    if mask_last:
        last = num_tiles - 1

        @pl.when(t < last)
        def _interior():                       # no mask cost on interior tiles
            o_ref[...] += _fold(elem)

        @pl.when(t == last)
        def _edge():                           # row-granular mask, single iota
            row = jax.lax.broadcasted_iota(jnp.int32, (tile_rows, _LANE), 0)
            valid = (t * tile_rows + row) < rows_full
            o_ref[...] += _fold(jnp.where(valid, elem, 0.0))
    elif skip_extra:
        @pl.when(t < num_tiles)
        def _valid():                          # skip clamped duplicate tiles
            o_ref[...] += _fold(elem)
    else:
        o_ref[...] += _fold(elem)


def kld_loss(outputs, targets, beta=0.1, tile_rows=8192, num_cores=None,
             min_kernel_elems=1 << 20):
    assert outputs.shape == targets.shape, "outputs/targets must match shapes"
    assert tile_rows % 16 == 0, "tile_rows must be a multiple of 16"
    n_true = int(outputs.size)
    assert n_true > 0
    inv_beta = float(1.0 / beta)

    rows_full = n_true // _LANE
    tail = n_true - rows_full * _LANE

    # Small-input fast path: launch overhead would dominate; let XLA fuse it.
    if n_true < min_kernel_elems or rows_full == 0:
        z = (outputs.astype(jnp.float32) - targets.astype(jnp.float32)) * inv_beta
        az = jnp.abs(z)
        elem = jnp.where(az < 1.0, 0.5 * z * z, az - 0.5)
        return jnp.sum(elem) * (beta / n_true)

    x = outputs.reshape(-1)
    y = targets.reshape(-1)

    if tail == 0:
        # Common case: pure metadata reshape, no HBM copy, no masking pad.
        x2 = x.reshape(rows_full, _LANE)
        y2 = y.reshape(rows_full, _LANE)
        tail_sum = jnp.float32(0.0)
    else:
        # Ragged case: kernel gets the full 128-wide rows; <128-element tail is
        # folded in with a trivial JAX sum (no full-array pad).
        # TODO(synk): a manual tail DMA inside the kernel would avoid the
        # prefix-slice materialization for very large ragged tensors.
        n128 = rows_full * _LANE
        x2 = jax.lax.slice(x, (0,), (n128,)).reshape(rows_full, _LANE)
        y2 = jax.lax.slice(y, (0,), (n128,)).reshape(rows_full, _LANE)
        xt = jax.lax.slice(x, (n128,), (n_true,)).astype(jnp.float32)
        yt = jax.lax.slice(y, (n128,), (n_true,)).astype(jnp.float32)
        zt = (xt - yt) * inv_beta
        azt = jnp.abs(zt)
        tail_sum = jnp.sum(jnp.where(azt < 1.0, 0.5 * zt * zt, azt - 0.5))

    # Row tile: large for HBM streaming, capped so 2 inputs x 2 buffers stay
    # <= ~16 MiB (fits v7x's smaller VMEM), clamped for small inputs.
    itemsize = x2.dtype.itemsize
    max_tr = (16 * 1024 * 1024) // (4 * _LANE * itemsize)   # 8192 f32 / 16384 bf16
    tr = max(16, min(tile_rows, max_tr, _round_up(rows_full, 16)))
    num_tiles = int(pl.cdiv(rows_full, tr))

    # Split the reduction across TensorCores only where there are 2 TCs (v7x).
    nc = num_cores if num_cores is not None else _default_num_cores()
    nc = max(1, min(int(nc), num_tiles))
    tpc = int(pl.cdiv(num_tiles, nc))

    mask_last = (rows_full % tr) != 0        # last real tile has OOB rows
    skip_extra = (nc * tpc) != num_tiles     # clamped duplicate tiles exist

    kernel = functools.partial(
        _kld_loss_kernel,
        inv_beta=inv_beta,
        tile_rows=tr,
        tiles_per_core=tpc,
        num_tiles=num_tiles,
        rows_full=rows_full,
        mask_last=mask_last,
        skip_extra=skip_extra,
    )

    if skip_extra:
        def in_map(c, i):
            # Clamp so over-allocated tiles on the last core DMA a valid block;
            # their contribution is skipped by pl.when in the kernel.
            return (jnp.minimum(c * tpc + i, num_tiles - 1), 0)
    else:
        def in_map(c, i):
            return (c * tpc + i, 0)

    block_bytes = tr * _LANE * itemsize
    vmem_limit = int(min(48 * 1024 * 1024,
                         max(32 * 1024 * 1024, 4 * block_bytes + (8 << 20))))

    partials = pl.pallas_call(
        kernel,
        out_shape=jax.ShapeDtypeStruct((nc * _SUB, _LANE), jnp.float32),
        grid_spec=pltpu.PrefetchScalarGridSpec(
            num_scalar_prefetch=0,
            grid=(nc, tpc),
            in_specs=[
                pl.BlockSpec((tr, _LANE), in_map),
                pl.BlockSpec((tr, _LANE), in_map),
            ],
            # Per-core lane-dense (8,128) partial-sum block, resident across i.
            out_specs=pl.BlockSpec((_SUB, _LANE), lambda c, i: (c, 0)),
        ),
        compiler_params=pltpu.CompilerParams(
            dimension_semantics=("parallel", "arbitrary"),
            vmem_limit_bytes=vmem_limit,
        ),
    )(x2, y2)

    # Final tiny reduce + scale (beta / n_true) in the wrapper.
    return (jnp.sum(partials) + tail_sum) * (beta / n_true)


def _reference(outputs, targets, beta=0.1):
    z = (outputs.astype(jnp.float32) - targets.astype(jnp.float32)) / beta
    az = jnp.abs(z)
    elem = jnp.where(az < 1.0, 0.5 * z * z, az - 0.5)
    return jnp.mean(elem) * beta


if __name__ == "__main__":
    key = jax.random.PRNGKey(0)
    k1, k2, k3, k4, k5, k6 = jax.random.split(key, 6)
    beta = 0.1

    # 1) Aligned NCHW-like small shape (2*4*16*16 = 2048 elements).
    shape1 = (2, 4, 16, 16)
    out1 = jax.random.normal(k1, shape1, dtype=jnp.float32)
    tgt1 = jax.random.normal(k2, shape1, dtype=jnp.float32)
    loss1 = jax.block_until_ready(kld_loss(out1, tgt1, beta=beta, min_kernel_elems=0))
    ref1 = _reference(out1, tgt1, beta=beta)
    assert jnp.allclose(loss1, ref1, rtol=1e-5, atol=1e-6), (loss1, ref1)

    # 2) Multi-tile accumulation path (small tile_rows forces several grid steps).
    shape2 = (2, 4, 32, 32)
    out2 = jax.random.normal(k3, shape2, dtype=jnp.float32)
    tgt2 = jax.random.normal(k4, shape2, dtype=jnp.float32)
    loss2 = jax.block_until_ready(
        kld_loss(out2, tgt2, beta=beta, tile_rows=16, min_kernel_elems=0))
    ref2 = _reference(out2, tgt2, beta=beta)
    assert jnp.allclose(loss2, ref2, rtol=1e-5, atol=1e-6), (loss2, ref2)

    # 3) Ragged size (exercises last-tile row mask + wrapper-side tail sum).
    shape3 = (3, 5, 7, 23)   # 2415 elements, not a multiple of 128
    out3 = jax.random.normal(k5, shape3, dtype=jnp.float32)
    tgt3 = jax.random.normal(k6, shape3, dtype=jnp.float32)
    loss3 = jax.block_until_ready(
        kld_loss(out3, tgt3, beta=beta, tile_rows=16, min_kernel_elems=0))
    ref3 = _reference(out3, tgt3, beta=beta)
    assert jnp.allclose(loss3, ref3, rtol=1e-5, atol=1e-6), (loss3, ref3)

    print("KERNEL_OK")
</pallas_src>

<mosaic_0001>
module attributes {stable_mosaic.version = 11 : i64} {
  func.func @_kld_loss_kernel(%arg0: i32, %arg1: i32, %arg2: memref<16x128xf32, #tpu.memory_space<vmem>>, %arg3: memref<16x128xf32, #tpu.memory_space<vmem>>, %arg4: memref<8x128xf32, #tpu.memory_space<vmem>>) attributes {dimension_semantics = [#tpu.dimension_semantics<parallel>, #tpu.dimension_semantics<arbitrary>], iteration_bounds = array<i64: 1, 1>, scalar_prefetch = 0 : i64, scratch_operands = 0 : i64, tpu.core_type = #tpu.core_type<tc>, window_params = [{transform_indices = @transform_0, window_bounds = array<i64: 16, 128>}, {transform_indices = @transform_1, window_bounds = array<i64: 16, 128>}, {transform_indices = @transform_2, window_bounds = array<i64: 8, 128>}]} {
    %c0_i32 = arith.constant 0 : i32
    %0 = arith.cmpi eq, %arg1, %c0_i32 : i32
    %1 = arith.extui %0 : i1 to i32
    %c0_i32_0 = arith.constant 0 : i32
    %2 = arith.cmpi ne, %1, %c0_i32_0 : i32
    scf.if %2 {
      %cst_12 = arith.constant 0.000000e+00 : f32
      %22 = vector.broadcast %cst_12 : f32 to vector<8x128xf32>
      %c0_13 = arith.constant 0 : index
      %c0_14 = arith.constant 0 : index
      %23 = vector.load %arg4[%c0_13, %c0_14] : memref<8x128xf32, #tpu.memory_space<vmem>>, vector<8x128xf32>
      tpu.vector_store %arg4[%c0_13, %c0_14], %22 {strides = array<i32>} : memref<8x128xf32, #tpu.memory_space<vmem>>, vector<8x128xf32>,
    } else {
    }
    %c0 = arith.constant 0 : index
    %c0_1 = arith.constant 0 : index
    %3 = vector.load %arg2[%c0, %c0_1] : memref<16x128xf32, #tpu.memory_space<vmem>>, vector<16x128xf32>
    %c0_2 = arith.constant 0 : index
    %c0_3 = arith.constant 0 : index
    %4 = vector.load %arg3[%c0_2, %c0_3] : memref<16x128xf32, #tpu.memory_space<vmem>>, vector<16x128xf32>
    %5 = arith.subf %3, %4 : vector<16x128xf32>
    %cst = arith.constant 1.000000e+01 : f32
    %6 = vector.broadcast %cst : f32 to vector<16x128xf32>
    %7 = arith.mulf %5, %6 : vector<16x128xf32>
    %8 = math.absf %7 : vector<16x128xf32>
    %cst_4 = arith.constant 1.000000e+00 : f32
    %9 = vector.broadcast %cst_4 : f32 to vector<16x128xf32>
    %10 = arith.cmpf olt, %8, %9 : vector<16x128xf32>
    %cst_5 = arith.constant 5.000000e-01 : f32
    %11 = vector.broadcast %cst_5 : f32 to vector<16x128xf32>
    %12 = arith.mulf %11, %7 : vector<16x128xf32>
    %13 = arith.mulf %12, %7 : vector<16x128xf32>
    %cst_6 = arith.constant 5.000000e-01 : f32
    %14 = vector.broadcast %cst_6 : f32 to vector<16x128xf32>
    %15 = arith.subf %8, %14 : vector<16x128xf32>
    %16 = arith.select %10, %13, %15 : vector<16x128xi1>, vector<16x128xf32>
    %c0_7 = arith.constant 0 : index
    %c0_8 = arith.constant 0 : index
    %17 = vector.load %arg4[%c0_7, %c0_8] : memref<8x128xf32, #tpu.memory_space<vmem>>, vector<8x128xf32>
    %18 = vector.shape_cast %16 : vector<16x128xf32> to vector<2x8x128xf32>
    %cst_9 = arith.constant dense<0.000000e+00> : vector<8x128xf32>
    %19 = vector.multi_reduction <add>, %18, %cst_9 [0] : vector<2x8x128xf32> to vector<8x128xf32>
    %20 = arith.addf %17, %19 : vector<8x128xf32>
    %c0_10 = arith.constant 0 : index
    %c0_11 = arith.constant 0 : index
    %21 = vector.load %arg4[%c0_10, %c0_11] : memref<8x128xf32, #tpu.memory_space<vmem>>, vector<8x128xf32>
    tpu.vector_store %arg4[%c0_10, %c0_11], %20 {strides = array<i32>} : memref<8x128xf32, #tpu.memory_space<vmem>>, vector<8x128xf32>,
    return
  }
  func.func @transform_0(%arg0: i32, %arg1: i32) -> (i32, i32) {
    %c1_i32 = arith.constant 1 : i32
    %0 = arith.muli %arg0, %c1_i32 : i32
    %1 = arith.addi %0, %arg1 : i32
    %c0_i32 = arith.constant 0 : i32
    %c0_i32_0 = arith.constant 0 : i32
    return %1, %c0_i32 : i32, i32
  }
  func.func @transform_1(%arg0: i32, %arg1: i32) -> (i32, i32) {
    %c1_i32 = arith.constant 1 : i32
    %0 = arith.muli %arg0, %c1_i32 : i32
    %1 = arith.addi %0, %arg1 : i32
    %c0_i32 = arith.constant 0 : i32
    %c0_i32_0 = arith.constant 0 : i32
    return %1, %c0_i32 : i32, i32
  }
  func.func @transform_2(%arg0: i32, %arg1: i32) -> (i32, i32) {
    %c0_i32 = arith.constant 0 : i32
    %c0_i32_0 = arith.constant 0 : i32
    return %arg0, %c0_i32 : i32, i32
  }
}

</mosaic_0001>

<llo_original>
// kernel: tpu_custom_call.1
$region0: #{tpu_custom_call.1}
  #allocation0 [shape = 'u32[]', space=smem, size = 0x4, offset = 0x4, fixed_abs, tag = 'smem constant byte address 0x4 - core index']
  #allocation1 [shape = 'u32[144,128]{1,0:T(1,128)}', space=vmem, size = 0x12000, scoped, tag = 'internal scratch']
  %s0 = inlined_call_operand.hbm [shape: f32[16,128], index: 0, kind: input, shape index: {}]
  %s1 = inlined_call_operand.hbm [shape: f32[16,128], index: 1, kind: input, shape index: {}]
  %s2 = inlined_call_operand.hbm [shape: f32[8,128], index: 2, kind: output, shape index: {}]
  %s3 = sld [smem:[#allocation0]]
  $region30: #{tpu_custom_call.1} parent=0
    _
  %s5 = ssub.s32 1, %s3
  %s6 = scalar_select 0, %s5, %s3
  $region1: #{tpu_custom_call.1} parent=0
    #allocation2 [shape = 'u8[8192]{0}', space=vmem, size = 0x2000, scoped, tag = 'input window, operand 0, single buffered']
    #allocation3 [shape = 's32[1]{0}', space=sflag, size = 0x4, scoped, tag = 'scoped memory for tpu_custom_call.1']
    #allocation4 [shape = 's32[1]{0}', space=sflag, size = 0x4, scoped, tag = 'scoped memory for tpu_custom_call.1']
    #allocation5 [shape = 'u8[8192]{0}', space=vmem, size = 0x2000, scoped, tag = 'input window, operand 1, single buffered']
    #allocation6 [shape = 's32[1]{0}', space=sflag, size = 0x4, scoped, tag = 'scoped memory for tpu_custom_call.1']
    #allocation7 [shape = 'u8[4096]{0}', space=vmem, size = 0x1000, scoped, tag = 'output window, operand 0, single buffered']
    %7 = vsyncpa [#allocation3], 0
    %8 = vsyncpa [#allocation6], 0
    %9 = vsyncpa [#allocation4], 0
    // Predicated region
    $region2: #{tpu_custom_call.1} parent=1 // pred_check
      _
    $region3: #{tpu_custom_call.1} parent=1 // pred_check_branch
      %11 = sbr.rel (0) target = $region5
    $region4: #{tpu_custom_call.1} parent=1 // pred_region
      %s12 = sadd.s32 0, 0
      %s13 = smul.u32 2, %s12
      %s15 = ssub.s32 256, 256
      %16 = vsyncadd [#allocation3], %s15
      %s17 = smul.addr %s13, 128
      %s18 = scalar_lea.hbm %s0, %s17
      %s19 = sshll.u32 [#allocation2], 4
      %s20 = int_to_ptr.vmem [resolvable:$true] %s19
      %25 = dma.hbm_to_vmem [thread:$0]  %s18, 256, %s20, [#allocation3], 128, 128, 8
    $region5: #{tpu_custom_call.1} parent=1 // pred_fallthru
      _
    // Predicated region
    $region6: #{tpu_custom_call.1} parent=1 // pred_check
      _
    $region7: #{tpu_custom_call.1} parent=1 // pred_check_branch
      %27 = sbr.rel (0) target = $region9
    $region8: #{tpu_custom_call.1} parent=1 // pred_region
      %s28 = sadd.s32 0, 0
      %s29 = smul.u32 2, %s28
      %s31 = ssub.s32 256, 256
      %32 = vsyncadd [#allocation6], %s31
      %s33 = smul.addr %s29, 128
      %s34 = scalar_lea.hbm %s1, %s33
      %s35 = sshll.u32 [#allocation5], 4
      %s36 = int_to_ptr.vmem [resolvable:$true] %s35
      %41 = dma.hbm_to_vmem [thread:$0]  %s34, 256, %s36, [#allocation6], 128, 128, 8
    $region9: #{tpu_custom_call.1} parent=1 // pred_fallthru
      _
    // Predicated region
    $region10: #{tpu_custom_call.1} parent=1 // pred_check
      _
    $region11: #{tpu_custom_call.1} parent=1 // pred_check_branch
      %43 = sbr.rel (0) target = $region13
    $region12: #{tpu_custom_call.1} parent=1 // pred_region
      %44 = dma.done [#allocation3], 256
    $region13: #{tpu_custom_call.1} parent=1 // pred_fallthru
      _
    // Predicated region
    $region14: #{tpu_custom_call.1} parent=1 // pred_check
      _
    $region15: #{tpu_custom_call.1} parent=1 // pred_check_branch
      %46 = sbr.rel (0) target = $region17
    $region16: #{tpu_custom_call.1} parent=1 // pred_region
      %47 = dma.done [#allocation6], 256
    $region17: #{tpu_custom_call.1} parent=1 // pred_fallthru
      _
    %s48 = sadd.s32 0, 0
    %s49 = smul.u32 2, %s48
    %s50 = sadd.s32 0, 0
    %s51 = smul.u32 2, %s50
    %p52 = scmp.eq.s32.totalorder 0, 0
    // Predicated region
    $region18: #{tpu_custom_call.1} parent=1 // pred_check
      %p53 = pneg %p52
    $region19: #{tpu_custom_call.1} parent=1 // pred_check_branch
      %55 = sbr.rel (%p53) target = $region21
    $region20: #{tpu_custom_call.1} parent=1 // pred_region
      %56 = vst [vmem:[#allocation7] sm:$0xff] 0.0
    $region21: #{tpu_custom_call.1} parent=1 // pred_fallthru
      _
    %v57 = vld [vmem:[#allocation2] sm:$0xff]
    %v58 = vld [vmem:[#allocation2 + $0x8] sm:$0xff]
    %v59 = vld [vmem:[#allocation5] sm:$0xff]
    %v60 = vld [vmem:[#allocation5 + $0x8] sm:$0xff]
    %v61 = vsub.f32 %v57, %v59
    %v62 = vsub.f32 %v58, %v60
    %v63 = vmul.f32 %v61, 10.0
    %v64 = vmul.f32 %v62, 10.0
    %v65 = vand.u32 2147483647, %v63
    %v66 = vand.u32 2147483647, %v64
    %vm67 = vcmp.lt.f32.partialorder %v65, 1.0
    %vm68 = vcmp.lt.f32.partialorder %v66, 1.0
    %v69 = vmul.f32 %v63, 0.5
    %v70 = vmul.f32 %v64, 0.5
    %v71 = vmul.f32 %v69, %v63
    %v72 = vmul.f32 %v70, %v64
    %v73 = vsub.f32 %v65, 0.5
    %v74 = vsub.f32 %v66, 0.5
    %v75 = vsel %vm67, %v71, %v73
    %v76 = vsel %vm68, %v72, %v74
    %v77 = vld [vmem:[#allocation7] sm:$0xff]
    %v78 = vadd.f32 %v75, %v76
    %v79 = vadd.f32 %v77, %v78
    %80 = vst [vmem:[#allocation7] sm:$0xff] %v79
    // Predicated region
    $region22: #{tpu_custom_call.1} parent=1 // pred_check
      _
    $region23: #{tpu_custom_call.1} parent=1 // pred_check_branch
      %82 = sbr.rel (0) target = $region25
    $region24: #{tpu_custom_call.1} parent=1 // pred_region
      %s84 = ssub.s32 128, 128
      %85 = vsyncadd [#allocation4], %s84
      %s87 = sshll.u32 [#allocation7], 4
      %s88 = int_to_ptr.vmem [resolvable:$true] %s87
      %90 = dma.vmem_to_hbm [thread:$0]  %s88, 128, %s2, [#allocation4]
    $region25: #{tpu_custom_call.1} parent=1 // pred_fallthru
      _
    // Predicated region
    $region26: #{tpu_custom_call.1} parent=1 // pred_check
      _
    $region27: #{tpu_custom_call.1} parent=1 // pred_check_branch
      %92 = sbr.rel (0) target = $region29
    $region28: #{tpu_custom_call.1} parent=1 // pred_region
      %93 = dma.done [#allocation4], 128
    $region29: #{tpu_custom_call.1} parent=1 // pred_fallthru
      _
    %94 = vsyncpa [#allocation3], 1
    %95 = vsyncpa [#allocation6], 1
    %96 = vsyncpa [#allocation4], 1

</llo_original>
